<compile_context>
chip_gen: v6e
topology: v6e:2x2x1
jax: 0.10.0
libtpu: 0.0.40
codegen_flags: <defaults>
</compile_context>

<pallas_src>
import jax
import jax.numpy as jnp
from jax.experimental import pallas as pl
from jax.experimental.pallas import tpu as pltpu

H1, H2, OUT = 128, 256, 1024
_BIAS_W = H1 + H2 + OUT          # 1408 = 11 * 128 (lane aligned slice points)


def _decompression_mlp_kernel(x_ref, w1_ref, w2_ref, w3_ref, bias_ref, o_ref):
    # Packed biases: static, lane-aligned slices (offsets 0, 128, 384).
    b1 = bias_ref[:, 0:H1]
    b2 = bias_ref[:, H1:H1 + H2]
    b3 = bias_ref[:, H1 + H2:_BIAS_W]

    x = x_ref[...].astype(jnp.bfloat16)                            # (TB, z)

    h = jnp.dot(x, w1_ref[...],
                preferred_element_type=jnp.float32) + b1           # f32
    h = jnp.maximum(h, 0.0)                                        # (TB, 128)

    h = jnp.dot(h.astype(jnp.bfloat16), w2_ref[...],
                preferred_element_type=jnp.float32) + b2
    h = jnp.maximum(h, 0.0)                                        # (TB, 256)

    out = jnp.dot(h.astype(jnp.bfloat16), w3_ref[...],
                  preferred_element_type=jnp.float32) + b3
    o_ref[...] = jax.nn.sigmoid(out).astype(o_ref.dtype)           # (TB, 1024)


def decompression_mlp(x, params, *, tb_max=1024):
    """x: (batch, z) f32; returns (batch, 1, 32, 32), matching PyTorch forward."""
    batch, z = x.shape

    # bf16 weights (MXU-native, halves weight HBM traffic); f32 packed biases.
    w1 = params["w1"].astype(jnp.bfloat16)      # (z, 128)
    w2 = params["w2"].astype(jnp.bfloat16)      # (128, 256)
    w3 = params["w3"].astype(jnp.bfloat16)      # (256, 1024)
    bias = jnp.concatenate(
        [params["b1"], params["b2"], params["b3"]], axis=-1
    ).astype(jnp.float32)                       # (1, 1408)

    # Batch tiling: TB capped at 1024 rows (sized for v7x's 64 MiB VMEM);
    # small batches run as a single grid step with TB == batch.
    tb = batch if batch <= tb_max else tb_max
    padded = pl.cdiv(batch, tb) * tb
    x_in = x if padded == batch else jnp.pad(x, ((0, padded - batch), (0, 0)))
    grid = (padded // tb,)

    flops = 2 * padded * (z * H1 + H1 * H2 + H2 * OUT) + padded * _BIAS_W
    bytes_accessed = (x_in.size * x_in.dtype.itemsize
                      + w1.size * 2 + w2.size * 2 + w3.size * 2
                      + bias.size * 4
                      + padded * OUT * 4)

    out = pl.pallas_call(
        _decompression_mlp_kernel,
        out_shape=jax.ShapeDtypeStruct((padded, OUT), jnp.float32),
        grid=grid,
        in_specs=[
            pl.BlockSpec((tb, z), lambda i: (i, 0)),           # x: blocked on batch
            pl.BlockSpec((z, H1), lambda i: (0, 0)),           # weights: resident
            pl.BlockSpec((H1, H2), lambda i: (0, 0)),
            pl.BlockSpec((H2, OUT), lambda i: (0, 0)),
            pl.BlockSpec((1, _BIAS_W), lambda i: (0, 0)),      # packed biases
        ],
        out_specs=pl.BlockSpec((tb, OUT), lambda i: (i, 0)),   # lane-dense output
        compiler_params=pltpu.CompilerParams(
            dimension_semantics=("parallel",)),
        cost_estimate=pl.CostEstimate(
            flops=flops,
            transcendentals=padded * OUT,      # sigmoid exp
            bytes_accessed=bytes_accessed),
    )(x_in, w1, w2, w3, bias)

    out = out[:batch]
    # Equivalent of PyTorch's x.view(b, 1, 32, 32) — pure layout, outside the
    # kernel so the kernel output stays lane-dense.
    return out.reshape(batch, 1, 32, 32)


def init_params(key, z, a, dtype=jnp.float32):
    """Deterministic synthetic init (PyTorch-Linear-style uniform).
    Weights stored as (in, out); biases as (1, out). `a` is unused by the
    module's forward and is mirrored here only for constructor parity."""
    del a
    dims = [(z, H1), (H1, H2), (H2, OUT)]
    params = {}
    for li, (din, dout) in enumerate(dims, start=1):
        key, kw, kb = jax.random.split(key, 3)
        scale = 1.0 / jnp.sqrt(jnp.asarray(din, dtype))
        params[f"w{li}"] = (jax.random.uniform(
            kw, (din, dout), dtype, minval=-1.0, maxval=1.0) * scale)
        params[f"b{li}"] = (jax.random.uniform(
            kb, (1, dout), dtype, minval=-1.0, maxval=1.0) * scale)
    return params


def reference_forward(x, params):
    """Pure-JAX reference mirroring the kernel's bf16-weight / f32-accumulate
    numerics (same math as the PyTorch forward with bf16-quantized weights)."""
    w1 = params["w1"].astype(jnp.bfloat16)
    w2 = params["w2"].astype(jnp.bfloat16)
    w3 = params["w3"].astype(jnp.bfloat16)
    h = jnp.dot(x.astype(jnp.bfloat16), w1,
                preferred_element_type=jnp.float32) + params["b1"]
    h = jnp.maximum(h, 0.0)
    h = jnp.dot(h.astype(jnp.bfloat16), w2,
                preferred_element_type=jnp.float32) + params["b2"]
    h = jnp.maximum(h, 0.0)
    out = jnp.dot(h.astype(jnp.bfloat16), w3,
                  preferred_element_type=jnp.float32) + params["b3"]
    out = jax.nn.sigmoid(out)
    return out.reshape(x.shape[0], 1, 32, 32)


if __name__ == "__main__":
    z, a = 16, 4          # `a` is unused by DeCompressionMLP.forward
    batch = 8

    key = jax.random.PRNGKey(0)
    key, kx = jax.random.split(key)
    x = jax.random.normal(kx, (batch, z), dtype=jnp.float32)
    params = init_params(key, z, a)

    out = decompression_mlp(x, params)
    out = jax.block_until_ready(out)

    ref = reference_forward(x, params)
    assert out.shape == (batch, 1, 32, 32)
    assert jnp.allclose(out, ref, atol=1e-2, rtol=1e-2), (
        float(jnp.max(jnp.abs(out - ref))))

    print("KERNEL_OK")
</pallas_src>

<mosaic_0001>
module attributes {stable_mosaic.version = 11 : i64} {
  func.func @_decompression_mlp_kernel(%arg0: i32, %arg1: memref<8x16xf32, #tpu.memory_space<vmem>>, %arg2: memref<16x128xbf16, #tpu.memory_space<vmem>>, %arg3: memref<128x256xbf16, #tpu.memory_space<vmem>>, %arg4: memref<256x1024xbf16, #tpu.memory_space<vmem>>, %arg5: memref<1x1408xf32, #tpu.memory_space<vmem>>, %arg6: memref<8x1024xf32, #tpu.memory_space<vmem>>) attributes {dimension_semantics = [#tpu.dimension_semantics<parallel>], iteration_bounds = array<i64: 1>, scalar_prefetch = 0 : i64, scratch_operands = 0 : i64, tpu.core_type = #tpu.core_type<tc>, window_params = [{transform_indices = @transform_0, window_bounds = array<i64: 8, 16>}, {pipeline_mode = #tpu.pipeline_mode<synchronous>, transform_indices = @transform_1, window_bounds = array<i64: 16, 128>}, {pipeline_mode = #tpu.pipeline_mode<synchronous>, transform_indices = @transform_2, window_bounds = array<i64: 128, 256>}, {pipeline_mode = #tpu.pipeline_mode<synchronous>, transform_indices = @transform_3, window_bounds = array<i64: 256, 1024>}, {pipeline_mode = #tpu.pipeline_mode<synchronous>, transform_indices = @transform_4, window_bounds = array<i64: 1, 1408>}, {transform_indices = @transform_5, window_bounds = array<i64: 8, 1024>}]} {
    %c0 = arith.constant 0 : index
    %c0_0 = arith.constant 0 : index
    %0 = vector.load %arg5[%c0, %c0_0] : memref<1x1408xf32, #tpu.memory_space<vmem>>, vector<1x128xf32>
    %c0_1 = arith.constant 0 : index
    %c128 = arith.constant 128 : index
    %1 = vector.load %arg5[%c0_1, %c128] : memref<1x1408xf32, #tpu.memory_space<vmem>>, vector<1x256xf32>
    %c0_2 = arith.constant 0 : index
    %c384 = arith.constant 384 : index
    %2 = vector.load %arg5[%c0_2, %c384] : memref<1x1408xf32, #tpu.memory_space<vmem>>, vector<1x1024xf32>
    %c0_3 = arith.constant 0 : index
    %c0_4 = arith.constant 0 : index
    %3 = vector.load %arg1[%c0_3, %c0_4] : memref<8x16xf32, #tpu.memory_space<vmem>>, vector<8x16xf32>
    %4 = arith.truncf %3 : vector<8x16xf32> to vector<8x16xbf16>
    %c0_5 = arith.constant 0 : index
    %c0_6 = arith.constant 0 : index
    %5 = vector.load %arg2[%c0_5, %c0_6] : memref<16x128xbf16, #tpu.memory_space<vmem>>, vector<16x128xbf16>
    %cst = arith.constant dense<0.000000e+00> : vector<8x128xf32>
    %6 = tpu.matmul %4, %5, %cst {dimension_numbers = #tpu.dot_dimension_numbers<[1], [0], [0], [1], [0, 0, 1, 1], [], []>} : vector<8x16xbf16>, vector<16x128xbf16>, vector<8x128xf32> -> vector<8x128xf32>
    %7 = vector.broadcast %0 : vector<1x128xf32> to vector<8x128xf32>
    %8 = arith.addf %6, %7 : vector<8x128xf32>
    %cst_7 = arith.constant 0.000000e+00 : f32
    %9 = vector.broadcast %cst_7 : f32 to vector<8x128xf32>
    %10 = arith.maximumf %8, %9 : vector<8x128xf32>
    %11 = arith.truncf %10 : vector<8x128xf32> to vector<8x128xbf16>
    %c0_8 = arith.constant 0 : index
    %c0_9 = arith.constant 0 : index
    %12 = vector.load %arg3[%c0_8, %c0_9] : memref<128x256xbf16, #tpu.memory_space<vmem>>, vector<128x256xbf16>
    %cst_10 = arith.constant dense<0.000000e+00> : vector<8x256xf32>
    %13 = tpu.matmul %11, %12, %cst_10 {dimension_numbers = #tpu.dot_dimension_numbers<[1], [0], [0], [1], [0, 0, 1, 1], [], []>} : vector<8x128xbf16>, vector<128x256xbf16>, vector<8x256xf32> -> vector<8x256xf32>
    %14 = vector.broadcast %1 : vector<1x256xf32> to vector<8x256xf32>
    %15 = arith.addf %13, %14 : vector<8x256xf32>
    %cst_11 = arith.constant 0.000000e+00 : f32
    %16 = vector.broadcast %cst_11 : f32 to vector<8x256xf32>
    %17 = arith.maximumf %15, %16 : vector<8x256xf32>
    %18 = arith.truncf %17 : vector<8x256xf32> to vector<8x256xbf16>
    %c0_12 = arith.constant 0 : index
    %c0_13 = arith.constant 0 : index
    %19 = vector.load %arg4[%c0_12, %c0_13] : memref<256x1024xbf16, #tpu.memory_space<vmem>>, vector<256x1024xbf16>
    %cst_14 = arith.constant dense<0.000000e+00> : vector<8x1024xf32>
    %20 = tpu.matmul %18, %19, %cst_14 {dimension_numbers = #tpu.dot_dimension_numbers<[1], [0], [0], [1], [0, 0, 1, 1], [], []>} : vector<8x256xbf16>, vector<256x1024xbf16>, vector<8x1024xf32> -> vector<8x1024xf32>
    %21 = vector.broadcast %2 : vector<1x1024xf32> to vector<8x1024xf32>
    %22 = arith.addf %20, %21 : vector<8x1024xf32>
    %23 = arith.negf %22 : vector<8x1024xf32>
    %24 = math.exp %23 : vector<8x1024xf32>
    %cst_15 = arith.constant 1.000000e+00 : f32
    %25 = vector.broadcast %cst_15 : f32 to vector<8x1024xf32>
    %26 = arith.addf %25, %24 : vector<8x1024xf32>
    %27 = arith.divf %25, %26 : vector<8x1024xf32>
    %c0_16 = arith.constant 0 : index
    %c0_17 = arith.constant 0 : index
    %28 = vector.load %arg6[%c0_16, %c0_17] : memref<8x1024xf32, #tpu.memory_space<vmem>>, vector<8x1024xf32>
    tpu.vector_store %arg6[%c0_16, %c0_17], %27 {strides = array<i32>} : memref<8x1024xf32, #tpu.memory_space<vmem>>, vector<8x1024xf32>,
    return
  }
  func.func @transform_0(%arg0: i32) -> (i32, i32) {
    %c0_i32 = arith.constant 0 : i32
    %c0_i32_0 = arith.constant 0 : i32
    return %arg0, %c0_i32 : i32, i32
  }
  func.func @transform_1(%arg0: i32) -> (i32, i32) {
    %c0_i32 = arith.constant 0 : i32
    %c0_i32_0 = arith.constant 0 : i32
    %c0_i32_1 = arith.constant 0 : i32
    return %c0_i32, %c0_i32_0 : i32, i32
  }
  func.func @transform_2(%arg0: i32) -> (i32, i32) {
    %c0_i32 = arith.constant 0 : i32
    %c0_i32_0 = arith.constant 0 : i32
    %c0_i32_1 = arith.constant 0 : i32
    return %c0_i32, %c0_i32_0 : i32, i32
  }
  func.func @transform_3(%arg0: i32) -> (i32, i32) {
    %c0_i32 = arith.constant 0 : i32
    %c0_i32_0 = arith.constant 0 : i32
    %c0_i32_1 = arith.constant 0 : i32
    return %c0_i32, %c0_i32_0 : i32, i32
  }
  func.func @transform_4(%arg0: i32) -> (i32, i32) {
    %c0_i32 = arith.constant 0 : i32
    %c0_i32_0 = arith.constant 0 : i32
    %c0_i32_1 = arith.constant 0 : i32
    return %c0_i32, %c0_i32_0 : i32, i32
  }
  func.func @transform_5(%arg0: i32) -> (i32, i32) {
    %c0_i32 = arith.constant 0 : i32
    %c0_i32_0 = arith.constant 0 : i32
    return %arg0, %c0_i32 : i32, i32
  }
}

</mosaic_0001>

<llo_original>
// kernel: tpu_custom_call.1
$region0: #{tpu_custom_call.1}
  #allocation0 [shape = 'u32[]', space=smem, size = 0x4, offset = 0x4, fixed_abs, tag = 'smem constant byte address 0x4 - core index']
  #allocation1 [shape = 'u32[144,128]{1,0:T(1,128)}', space=vmem, size = 0x12000, scoped, tag = 'internal scratch']
  %s0 = inlined_call_operand.hbm [shape: f32[8,16], index: 0, kind: input, shape index: {}]
  %s1 = inlined_call_operand.hbm [shape: bf16[16,128], index: 1, kind: input, shape index: {}]
  %s2 = inlined_call_operand.hbm [shape: bf16[128,256], index: 2, kind: input, shape index: {}]
  %s3 = inlined_call_operand.hbm [shape: bf16[256,1024], index: 3, kind: input, shape index: {}]
  %s4 = inlined_call_operand.hbm [shape: f32[1,1408], index: 4, kind: input, shape index: {}]
  %s5 = inlined_call_operand.hbm [shape: f32[8,1024], index: 5, kind: output, shape index: {}]
  %s6 = sld [smem:[#allocation0]]
  $region50: #{tpu_custom_call.1} parent=0
    _
  %s8 = ssub.s32 1, %s6
  %s9 = scalar_select 0, %s8, %s6
  $region1: #{tpu_custom_call.1} parent=0
    #allocation2 [shape = 'u8[4096]{0}', space=vmem, size = 0x1000, scoped, tag = 'input window, operand 0, single buffered']
    #allocation3 [shape = 's32[1]{0}', space=sflag, size = 0x4, scoped, tag = 'scoped memory for tpu_custom_call.1']
    #allocation4 [shape = 's32[1]{0}', space=sflag, size = 0x4, scoped, tag = 'scoped memory for tpu_custom_call.1']
    #allocation5 [shape = 'u8[4096]{0}', space=vmem, size = 0x1000, scoped, tag = 'input window, operand 1, single buffered']
    #allocation6 [shape = 's32[1]{0}', space=sflag, size = 0x4, scoped, tag = 'scoped memory for tpu_custom_call.1']
    #allocation7 [shape = 'u8[65536]{0}', space=vmem, size = 0x10000, scoped, tag = 'input window, operand 2, single buffered']
    #allocation8 [shape = 'u8[524288]{0}', space=vmem, size = 0x80000, scoped, tag = 'input window, operand 3, single buffered']
    #allocation9 [shape = 's32[1]{0}', space=sflag, size = 0x4, scoped, tag = 'scoped memory for tpu_custom_call.1']
    #allocation10 [shape = 'u8[5632]{0}', space=vmem, size = 0x1800, scoped, tag = 'input window, operand 4, single buffered']
    #allocation11 [shape = 'u8[32768]{0}', space=vmem, size = 0x8000, scoped, tag = 'output window, operand 0, single buffered']
    %10 = vsyncpa [#allocation3], 0
    %11 = vsyncpa [#allocation6], 0
    %12 = vsyncpa [#allocation9], 0
    %13 = vsyncpa [#allocation4], 0
    // Predicated region
    $region2: #{tpu_custom_call.1} parent=1 // pred_check
      _
    $region3: #{tpu_custom_call.1} parent=1 // pred_check_branch
      %15 = sbr.rel (0) target = $region5
    $region4: #{tpu_custom_call.1} parent=1 // pred_region
      %s17 = ssub.s32 128, 128
      %18 = vsyncadd [#allocation3], %s17
      %s20 = sshll.u32 [#allocation2], 4
      %s21 = int_to_ptr.vmem [resolvable:$true] %s20
      %23 = dma.hbm_to_vmem [thread:$0]  %s0, 128, %s21, [#allocation3]
    $region5: #{tpu_custom_call.1} parent=1 // pred_fallthru
      _
    // Predicated region
    $region6: #{tpu_custom_call.1} parent=1 // pred_check
      _
    $region7: #{tpu_custom_call.1} parent=1 // pred_check_branch
      %25 = sbr.rel (0) target = $region9
    $region8: #{tpu_custom_call.1} parent=1 // pred_region
      %s27 = ssub.s32 128, 128
      %28 = vsyncadd [#allocation6], %s27
      %s29 = sshll.u32 [#allocation5], 4
      %s30 = int_to_ptr.vmem [resolvable:$true] %s29
      %35 = dma.hbm_to_vmem [thread:$0]  %s1, 128, %s30, [#allocation6], 64, 64, 4
    $region9: #{tpu_custom_call.1} parent=1 // pred_fallthru
      _
    // Predicated region
    $region10: #{tpu_custom_call.1} parent=1 // pred_check
      _
    $region11: #{tpu_custom_call.1} parent=1 // pred_check_branch
      %37 = sbr.rel (0) target = $region13
    $region12: #{tpu_custom_call.1} parent=1 // pred_region
      %s39 = ssub.s32 2048, 2048
      %40 = vsyncadd [#allocation6], %s39
      %s41 = sshll.u32 [#allocation7], 4
      %s42 = int_to_ptr.vmem [resolvable:$true] %s41
      %47 = dma.hbm_to_vmem [thread:$0]  %s2, 2048, %s42, [#allocation6], 128, 128, 8
    $region13: #{tpu_custom_call.1} parent=1 // pred_fallthru
      _
    // Predicated region
    $region14: #{tpu_custom_call.1} parent=1 // pred_check
      _
    $region15: #{tpu_custom_call.1} parent=1 // pred_check_branch
      %49 = sbr.rel (0) target = $region17
    $region16: #{tpu_custom_call.1} parent=1 // pred_region
      %s51 = ssub.s32 16384, 16384
      %52 = vsyncadd [#allocation9], %s51
      %s53 = sshll.u32 [#allocation8], 4
      %s54 = int_to_ptr.vmem [resolvable:$true] %s53
      %59 = dma.hbm_to_vmem [thread:$0]  %s3, 16384, %s54, [#allocation9], 512, 512, 32
    $region17: #{tpu_custom_call.1} parent=1 // pred_fallthru
      _
    // Predicated region
    $region18: #{tpu_custom_call.1} parent=1 // pred_check
      _
    $region19: #{tpu_custom_call.1} parent=1 // pred_check_branch
      %61 = sbr.rel (0) target = $region21
    $region20: #{tpu_custom_call.1} parent=1 // pred_region
      %s63 = ssub.s32 176, 176
      %64 = vsyncadd [#allocation9], %s63
      %s66 = sshll.u32 [#allocation10], 4
      %s67 = int_to_ptr.vmem [resolvable:$true] %s66
      %69 = dma.hbm_to_vmem [thread:$0]  %s4, 176, %s67, [#allocation9]
    $region21: #{tpu_custom_call.1} parent=1 // pred_fallthru
      _
    // Predicated region
    $region22: #{tpu_custom_call.1} parent=1 // pred_check
      _
    $region23: #{tpu_custom_call.1} parent=1 // pred_check_branch
      %71 = sbr.rel (0) target = $region25
    $region24: #{tpu_custom_call.1} parent=1 // pred_region
      %72 = dma.done [#allocation3], 128
    $region25: #{tpu_custom_call.1} parent=1 // pred_fallthru
      _
    // Predicated region
    $region26: #{tpu_custom_call.1} parent=1 // pred_check
      _
    $region27: #{tpu_custom_call.1} parent=1 // pred_check_branch
      %74 = sbr.rel (0) target = $region29
    $region28: #{tpu_custom_call.1} parent=1 // pred_region
      %75 = dma.done [#allocation6], 128
    $region29: #{tpu_custom_call.1} parent=1 // pred_fallthru
      _
    // Predicated region
    $region30: #{tpu_custom_call.1} parent=1 // pred_check
      _
    $region31: #{tpu_custom_call.1} parent=1 // pred_check_branch
      %77 = sbr.rel (0) target = $region33
    $region32: #{tpu_custom_call.1} parent=1 // pred_region
      %78 = dma.done [#allocation6], 2048
    $region33: #{tpu_custom_call.1} parent=1 // pred_fallthru
      _
    // Predicated region
    $region34: #{tpu_custom_call.1} parent=1 // pred_check
      _
    $region35: #{tpu_custom_call.1} parent=1 // pred_check_branch
      %80 = sbr.rel (0) target = $region37
    $region36: #{tpu_custom_call.1} parent=1 // pred_region
      %81 = dma.done [#allocation9], 16384
    $region37: #{tpu_custom_call.1} parent=1 // pred_fallthru
      _
    // Predicated region
    $region38: #{tpu_custom_call.1} parent=1 // pred_check
      _
    $region39: #{tpu_custom_call.1} parent=1 // pred_check_branch
      %83 = sbr.rel (0) target = $region41
    $region40: #{tpu_custom_call.1} parent=1 // pred_region
      %84 = dma.done [#allocation9], 176
    $region41: #{tpu_custom_call.1} parent=1 // pred_fallthru
      _
    %v86 = vld [vmem:[#allocation10] sm:$0x1]
    %v87 = vld [vmem:[#allocation10 + $0x1] sm:$0x3]
    %v88 = vld [vmem:[#allocation10 + $0x3] sm:$0xff]
    %v89 = vld [vmem:[#allocation2] sm:$0xff]
    %v90 = vpack.c.bf16 %v89, %v89
    %v91 = vld [vmem:[#allocation5] sm:$0xf]
    %v92 = vld [vmem:[#allocation5 + $0x4] sm:$0xf]
    %v94 = vlaneseq
    %v95 = vshrl.u32 %v94, 7
    %v96 = vsub.s32 0, %v95
    %v97 = vrot.slane %v86, %v96
    %v101 = vunpack.c.l.b16 %v91
    %v102 = vunpack.c.l.b16 %v92
    %v103 = vpack.c.b16 %v102, %v101
    %vm105 = vcmask 130048
    %v107 = vsel %vm105, %v90, 0
    %109 = vmatprep.subr.bf16.mxu0 0
    %110 = vmatpush1.bf16.msra.mxu0 0
    %111 = vmatprep.subr.bf16.mxu0 0
    %112 = vmatpush1.bf16.msra.mxu0 0
    %113 = vmatprep.subr.bf16.mxu0 0
    %114 = vmatpush1.bf16.msra.mxu0 0
    %115 = vmatprep.subr.bf16.mxu0 0
    %116 = vmatpush1.bf16.msra.mxu0 0
    %117 = vmatprep.subr.bf16.mxu0 0
    %118 = vmatpush1.bf16.msra.mxu0 0
    %119 = vmatprep.subr.bf16.mxu0 0
    %120 = vmatpush1.bf16.msra.mxu0 0
    %121 = vmatprep.subr.bf16.mxu0 0
    %122 = vmatpush1.bf16.msra.mxu0 0
    %123 = vmatprep.subr.bf16.mxu0 0
    %124 = vmatpush1.bf16.msra.mxu0 %v103
    %125 = vmatprep.subr.bf16.mxu0 0
    %126 = vmatpush2.bf16.msra.mxu0 0
    %127 = vmatprep.subr.bf16.mxu0 0
    %128 = vmatpush2.bf16.msra.mxu0 0
    %129 = vmatprep.subr.bf16.mxu0 0
    %130 = vmatpush2.bf16.msra.mxu0 0
    %131 = vmatprep.subr.bf16.mxu0 0
    %132 = vmatpush2.bf16.msra.mxu0 0
    %133 = vmatprep.subr.bf16.mxu0 0
    %134 = vmatpush2.bf16.msra.mxu0 0
    %135 = vmatprep.subr.bf16.mxu0 0
    %136 = vmatpush2.bf16.msra.mxu0 0
    %137 = vmatprep.subr.bf16.mxu0 0
    %138 = vmatpush2.bf16.msra.mxu0 0
    %139 = vmatprep.subr.bf16.mxu0 0
    %140 = vmatpush2.bf16.msra.mxu0 0
    %141 = vmatprep.mubr.bf16.mxu0 0
    %142 = vmatmul.mubr.bf16.gmra.mxu0 %v107
    %v143 = vpop.f32.mrf.mxu0
    %v144 = vadd.f32 %v97, %v143
    %v145 = vpop.f32.mrf.mxu0
    %v146 = vpop.f32.mrf.mxu0
    %v147 = vpop.f32.mrf.mxu0
    %148 = vdwg.mxu0
    %v149 = vmax.f32 %v144, 0.0
    %v150 = vpack.c.bf16 %v149, %v149
    %v151 = vld [vmem:[#allocation7] sm:$0xff]
    %v152 = vld [vmem:[#allocation7 + $0x8] sm:$0xff]
    %v153 = vld [vmem:[#allocation7 + $0x10] sm:$0xff]
    %v154 = vld [vmem:[#allocation7 + $0x18] sm:$0xff]
    %v155 = vld [vmem:[#allocation7 + $0x20] sm:$0xff]
    %v156 = vld [vmem:[#allocation7 + $0x28] sm:$0xff]
    %v157 = vld [vmem:[#allocation7 + $0x30] sm:$0xff]
    %v158 = vld [vmem:[#allocation7 + $0x38] sm:$0xff]
    %v159 = vld [vmem:[#allocation7 + $0x40] sm:$0xff]
    %v160 = vld [vmem:[#allocation7 + $0x48] sm:$0xff]
    %v161 = vld [vmem:[#allocation7 + $0x50] sm:$0xff]
    %v162 = vld [vmem:[#allocation7 + $0x58] sm:$0xff]
    %v163 = vld [vmem:[#allocation7 + $0x60] sm:$0xff]
    %v164 = vld [vmem:[#allocation7 + $0x68] sm:$0xff]
    %v165 = vld [vmem:[#allocation7 + $0x70] sm:$0xff]
    %v166 = vld [vmem:[#allocation7 + $0x78] sm:$0xff]
    %v168 = vlaneseq
    %v169 = vshrl.u32 %v168, 7
    %v170 = vsub.s32 0, %v169
    %v171 = vrot.slane %v87, %v170
    %v172 = vlaneseq
    %v173 = vshrl.u32 %v172, 7
    %v174 = vsub.s32 1, %v173
    %v175 = vrot.slane %v87, %v174
    %v194 = vunpack.c.l.b16 %v151
    %v195 = vunpack.c.h.b16 %v151
    %v196 = vunpack.c.l.b16 %v152
    %v197 = vunpack.c.h.b16 %v152
    %v198 = vunpack.c.l.b16 %v153
    %v199 = vunpack.c.h.b16 %v153
    %v200 = vunpack.c.l.b16 %v154
    %v201 = vunpack.c.h.b16 %v154
    %v202 = vunpack.c.l.b16 %v155
    %v203 = vunpack.c.h.b16 %v155
    %v204 = vunpack.c.l.b16 %v156
    %v205 = vunpack.c.h.b16 %v156
    %v206 = vunpack.c.l.b16 %v157
    %v207 = vunpack.c.h.b16 %v157
    %v208 = vunpack.c.l.b16 %v158
    %v209 = vunpack.c.h.b16 %v158
    %v210 = vunpack.c.l.b16 %v159
    %v211 = vunpack.c.h.b16 %v159
    %v212 = vunpack.c.l.b16 %v160
    %v213 = vunpack.c.h.b16 %v160
    %v214 = vunpack.c.l.b16 %v161
    %v215 = vunpack.c.h.b16 %v161
    %v216 = vunpack.c.l.b16 %v162
    %v217 = vunpack.c.h.b16 %v162
    %v218 = vunpack.c.l.b16 %v163
    %v219 = vunpack.c.h.b16 %v163
    %v220 = vunpack.c.l.b16 %v164
    %v221 = vunpack.c.h.b16 %v164
    %v222 = vunpack.c.l.b16 %v165
    %v223 = vunpack.c.h.b16 %v165
    %v224 = vunpack.c.l.b16 %v166
    %v225 = vunpack.c.h.b16 %v166
    %v226 = vpack.c.b16 %v196, %v194
    %v227 = vpack.c.b16 %v197, %v195
    %v228 = vpack.c.b16 %v200, %v198
    %v229 = vpack.c.b16 %v201, %v199
    %v230 = vpack.c.b16 %v204, %v202
    %v231 = vpack.c.b16 %v205, %v203
    %v232 = vpack.c.b16 %v208, %v206
    %v233 = vpack.c.b16 %v209, %v207
    %v234 = vpack.c.b16 %v212, %v210
    %v235 = vpack.c.b16 %v213, %v211
    %v236 = vpack.c.b16 %v216, %v214
    %v237 = vpack.c.b16 %v217, %v215
    %v238 = vpack.c.b16 %v220, %v218
    %v239 = vpack.c.b16 %v221, %v219
    %v240 = vpack.c.b16 %v224, %v222
    %v241 = vpack.c.b16 %v225, %v223
    %258 = vmatprep.subr.bf16.mxu0 %v241
    %259 = vmatpush1.bf16.msra.mxu0 %v240
    %260 = vmatprep.subr.bf16.mxu0 %v239
    %261 = vmatpush1.bf16.msra.mxu0 %v238
    %262 = vmatprep.subr.bf16.mxu0 %v237
    %263 = vmatpush1.bf16.msra.mxu0 %v236
    %264 = vmatprep.subr.bf16.mxu0 %v235
    %265 = vmatpush1.bf16.msra.mxu0 %v234
    %266 = vmatprep.subr.bf16.mxu0 %v233
    %267 = vmatpush1.bf16.msra.mxu0 %v232
    %268 = vmatprep.subr.bf16.mxu0 %v231
    %269 = vmatpush1.bf16.msra.mxu0 %v230
    %270 = vmatprep.subr.bf16.mxu0 %v229
    %271 = vmatpush1.bf16.msra.mxu0 %v228
    %272 = vmatprep.subr.bf16.mxu0 %v227
    %273 = vmatpush1.bf16.msra.mxu0 %v226
    %274 = vmatprep.subr.bf16.mxu0 0
    %275 = vmatpush2.bf16.msra.mxu0 0
    %276 = vmatprep.subr.bf16.mxu0 0
    %277 = vmatpush2.bf16.msra.mxu0 0
    %278 = vmatprep.subr.bf16.mxu0 0
    %279 = vmatpush2.bf16.msra.mxu0 0
    %280 = vmatprep.subr.bf16.mxu0 0
    %281 = vmatpush2.bf16.msra.mxu0 0
    %282 = vmatprep.subr.bf16.mxu0 0
    %283 = vmatpush2.bf16.msra.mxu0 0
    %284 = vmatprep.subr.bf16.mxu0 0
    %285 = vmatpush2.bf16.msra.mxu0 0
    %286 = vmatprep.subr.bf16.mxu0 0
    %287 = vmatpush2.bf16.msra.mxu0 0
    %288 = vmatprep.subr.bf16.mxu0 0
    %289 = vmatpush2.bf16.msra.mxu0 0
    %290 = vmatprep.mubr.bf16.mxu0 0
    %291 = vmatmul.mubr.bf16.gmra.mxu0 %v150
    %v292 = vpop.f32.mrf.mxu0
    %v293 = vadd.f32 %v171, %v292
    %v294 = vpop.f32.mrf.mxu0
    %v295 = vadd.f32 %v175, %v294
    %v296 = vpop.f32.mrf.mxu0
    %v297 = vpop.f32.mrf.mxu0
    %298 = vdwg.mxu0
    %v299 = vmax.f32 %v293, 0.0
    %v300 = vmax.f32 %v295, 0.0
    %v301 = vpack.c.bf16 %v299, %v299
    %v302 = vpack.c.bf16 %v300, %v300
    %v303 = vld [vmem:[#allocation8] sm:$0xff]
    %v304 = vld [vmem:[#allocation8 + $0x8] sm:$0xff]
    %v305 = vld [vmem:[#allocation8 + $0x10] sm:$0xff]
    %v306 = vld [vmem:[#allocation8 + $0x18] sm:$0xff]
    %v307 = vld [vmem:[#allocation8 + $0x20] sm:$0xff]
    %v308 = vld [vmem:[#allocation8 + $0x28] sm:$0xff]
    %v309 = vld [vmem:[#allocation8 + $0x30] sm:$0xff]
    %v310 = vld [vmem:[#allocation8 + $0x38] sm:$0xff]
    %v311 = vld [vmem:[#allocation8 + $0x40] sm:$0xff]
    %v312 = vld [vmem:[#allocation8 + $0x48] sm:$0xff]
    %v313 = vld [vmem:[#allocation8 + $0x50] sm:$0xff]
    %v314 = vld [vmem:[#allocation8 + $0x58] sm:$0xff]
    %v315 = vld [vmem:[#allocation8 + $0x60] sm:$0xff]
    %v316 = vld [vmem:[#allocation8 + $0x68] sm:$0xff]
    %v317 = vld [vmem:[#allocation8 + $0x70] sm:$0xff]
    %v318 = vld [vmem:[#allocation8 + $0x78] sm:$0xff]
    %v319 = vld [vmem:[#allocation8 + $0x80] sm:$0xff]
    %v320 = vld [vmem:[#allocation8 + $0x88] sm:$0xff]
    %v321 = vld [vmem:[#allocation8 + $0x90] sm:$0xff]
    %v322 = vld [vmem:[#allocation8 + $0x98] sm:$0xff]
    %v323 = vld [vmem:[#allocation8 + $0xa0] sm:$0xff]
    %v324 = vld [vmem:[#allocation8 + $0xa8] sm:$0xff]
    %v325 = vld [vmem:[#allocation8 + $0xb0] sm:$0xff]
    %v326 = vld [vmem:[#allocation8 + $0xb8] sm:$0xff]
    %v327 = vld [vmem:[#allocation8 + $0xc0] sm:$0xff]
    %v328 = vld [vmem:[#allocation8 + $0xc8] sm:$0xff]
    %v329 = vld [vmem:[#allocation8 + $0xd0] sm:$0xff]
    %v330 = vld [vmem:[#allocation8 + $0xd8] sm:$0xff]
    %v331 = vld [vmem:[#allocation8 + $0xe0] sm:$0xff]
    %v332 = vld [vmem:[#allocation8 + $0xe8] sm:$0xff]
    %v333 = vld [vmem:[#allocation8 + $0xf0] sm:$0xff]
    %v334 = vld [vmem:[#allocation8 + $0xf8] sm:$0xff]
    %v335 = vld [vmem:[#allocation8 + $0x100] sm:$0xff]
    %v336 = vld [vmem:[#allocation8 + $0x108] sm:$0xff]
    %v337 = vld [vmem:[#allocation8 + $0x110] sm:$0xff]
    %v338 = vld [vmem:[#allocation8 + $0x118] sm:$0xff]
    %v339 = vld [vmem:[#allocation8 + $0x120] sm:$0xff]
    %v340 = vld [vmem:[#allocation8 + $0x128] sm:$0xff]
    %v341 = vld [vmem:[#allocation8 + $0x130] sm:$0xff]
    %v342 = vld [vmem:[#allocation8 + $0x138] sm:$0xff]
    %v343 = vld [vmem:[#allocation8 + $0x140] sm:$0xff]
    %v344 = vld [vmem:[#allocation8 + $0x148] sm:$0xff]
    %v345 = vld [vmem:[#allocation8 + $0x150] sm:$0xff]
    %v346 = vld [vmem:[#allocation8 + $0x158] sm:$0xff]
    %v347 = vld [vmem:[#allocation8 + $0x160] sm:$0xff]
    %v348 = vld [vmem:[#allocation8 + $0x168] sm:$0xff]
    %v349 = vld [vmem:[#allocation8 + $0x170] sm:$0xff]
    %v350 = vld [vmem:[#allocation8 + $0x178] sm:$0xff]
    %v351 = vld [vmem:[#allocation8 + $0x180] sm:$0xff]
    %v352 = vld [vmem:[#allocation8 + $0x188] sm:$0xff]
    %v353 = vld [vmem:[#allocation8 + $0x190] sm:$0xff]
    %v354 = vld [vmem:[#allocation8 + $0x198] sm:$0xff]
    %v355 = vld [vmem:[#allocation8 + $0x1a0] sm:$0xff]
    %v356 = vld [vmem:[#allocation8 + $0x1a8] sm:$0xff]
    %v357 = vld [vmem:[#allocation8 + $0x1b0] sm:$0xff]
    %v358 = vld [vmem:[#allocation8 + $0x1b8] sm:$0xff]
    %v359 = vld [vmem:[#allocation8 + $0x1c0] sm:$0xff]
    %v360 = vld [vmem:[#allocation8 + $0x1c8] sm:$0xff]
    %v361 = vld [vmem:[#allocation8 + $0x1d0] sm:$0xff]
    %v362 = vld [vmem:[#allocation8 + $0x1d8] sm:$0xff]
    %v363 = vld [vmem:[#allocation8 + $0x1e0] sm:$0xff]
    %v364 = vld [vmem:[#allocation8 + $0x1e8] sm:$0xff]
    %v365 = vld [vmem:[#allocation8 + $0x1f0] sm:$0xff]
    %v366 = vld [vmem:[#allocation8 + $0x1f8] sm:$0xff]
    %v367 = vld [vmem:[#allocation8 + $0x200] sm:$0xff]
    %v368 = vld [vmem:[#allocation8 + $0x208] sm:$0xff]
    %v369 = vld [vmem:[#allocation8 + $0x210] sm:$0xff]
    %v370 = vld [vmem:[#allocation8 + $0x218] sm:$0xff]
    %v371 = vld [vmem:[#allocation8 + $0x220] sm:$0xff]
    %v372 = vld [vmem:[#allocation8 + $0x228] sm:$0xff]
    %v373 = vld [vmem:[#allocation8 + $0x230] sm:$0xff]
    %v374 = vld [vmem:[#allocation8 + $0x238] sm:$0xff]
    %v375 = vld [vmem:[#allocation8 + $0x240] sm:$0xff]
    %v376 = vld [vmem:[#allocation8 + $0x248] sm:$0xff]
    %v377 = vld [vmem:[#allocation8 + $0x250] sm:$0xff]
    %v378 = vld [vmem:[#allocation8 + $0x258] sm:$0xff]
    %v379 = vld [vmem:[#allocation8 + $0x260] sm:$0xff]
    %v380 = vld [vmem:[#allocation8 + $0x268] sm:$0xff]
    %v381 = vld [vmem:[#allocation8 + $0x270] sm:$0xff]
    %v382 = vld [vmem:[#allocation8 + $0x278] sm:$0xff]
    %v383 = vld [vmem:[#allocation8 + $0x280] sm:$0xff]
    %v384 = vld [vmem:[#allocation8 + $0x288] sm:$0xff]
    %v385 = vld [vmem:[#allocation8 + $0x290] sm:$0xff]
    %v386 = vld [vmem:[#allocation8 + $0x298] sm:$0xff]
    %v387 = vld [vmem:[#allocation8 + $0x2a0] sm:$0xff]
    %v388 = vld [vmem:[#allocation8 + $0x2a8] sm:$0xff]
    %v389 = vld [vmem:[#allocation8 + $0x2b0] sm:$0xff]
    %v390 = vld [vmem:[#allocation8 + $0x2b8] sm:$0xff]
    %v391 = vld [vmem:[#allocation8 + $0x2c0] sm:$0xff]
    %v392 = vld [vmem:[#allocation8 + $0x2c8] sm:$0xff]
    %v393 = vld [vmem:[#allocation8 + $0x2d0] sm:$0xff]
    %v394 = vld [vmem:[#allocation8 + $0x2d8] sm:$0xff]
    %v395 = vld [vmem:[#allocation8 + $0x2e0] sm:$0xff]
    %v396 = vld [vmem:[#allocation8 + $0x2e8] sm:$0xff]
    %v397 = vld [vmem:[#allocation8 + $0x2f0] sm:$0xff]
    %v398 = vld [vmem:[#allocation8 + $0x2f8] sm:$0xff]
    %v399 = vld [vmem:[#allocation8 + $0x300] sm:$0xff]
    %v400 = vld [vmem:[#allocation8 + $0x308] sm:$0xff]
    %v401 = vld [vmem:[#allocation8 + $0x310] sm:$0xff]
    %v402 = vld [vmem:[#allocation8 + $0x318] sm:$0xff]
    %v403 = vld [vmem:[#allocation8 + $0x320] sm:$0xff]
    %v404 = vld [vmem:[#allocation8 + $0x328] sm:$0xff]
    %v405 = vld [vmem:[#allocation8 + $0x330] sm:$0xff]
    %v406 = vld [vmem:[#allocation8 + $0x338] sm:$0xff]
    %v407 = vld [vmem:[#allocation8 + $0x340] sm:$0xff]
    %v408 = vld [vmem:[#allocation8 + $0x348] sm:$0xff]
    %v409 = vld [vmem:[#allocation8 + $0x350] sm:$0xff]
    %v410 = vld [vmem:[#allocation8 + $0x358] sm:$0xff]
    %v411 = vld [vmem:[#allocation8 + $0x360] sm:$0xff]
    %v412 = vld [vmem:[#allocation8 + $0x368] sm:$0xff]
    %v413 = vld [vmem:[#allocation8 + $0x370] sm:$0xff]
    %v414 = vld [vmem:[#allocation8 + $0x378] sm:$0xff]
    %v415 = vld [vmem:[#allocation8 + $0x380] sm:$0xff]
    %v416 = vld [vmem:[#allocation8 + $0x388] sm:$0xff]
    %v417 = vld [vmem:[#allocation8 + $0x390] sm:$0xff]
    %v418 = vld [vmem:[#allocation8 + $0x398] sm:$0xff]
    %v419 = vld [vmem:[#allocation8 + $0x3a0] sm:$0xff]
    %v420 = vld [vmem:[#allocation8 + $0x3a8] sm:$0xff]
    %v421 = vld [vmem:[#allocation8 + $0x3b0] sm:$0xff]
    %v422 = vld [vmem:[#allocation8 + $0x3b8] sm:$0xff]
    %v423 = vld [vmem:[#allocation8 + $0x3c0] sm:$0xff]
    %v424 = vld [vmem:[#allocation8 + $0x3c8] sm:$0xff]
    %v425 = vld [vmem:[#allocation8 + $0x3d0] sm:$0xff]
    %v426 = vld [vmem:[#allocation8 + $0x3d8] sm:$0xff]
    %v427 = vld [vmem:[#allocation8 + $0x3e0] sm:$0xff]
    %v428 = vld [vmem:[#allocation8 + $0x3e8] sm:$0xff]
    %v429 = vld [vmem:[#allocation8 + $0x3f0] sm:$0xff]
    %v430 = vld [vmem:[#allocation8 + $0x3f8] sm:$0xff]
    %v432 = vlaneseq
    %v433 = vshrl.u32 %v432, 7
    %v434 = vsub.s32 0, %v433
    %v435 = vrot.slane %v88, %v434
    %v436 = vlaneseq
    %v437 = vshrl.u32 %v436, 7
    %v438 = vsub.s32 1, %v437
    %v439 = vrot.slane %v88, %v438
    %v440 = vlaneseq
    %v441 = vshrl.u32 %v440, 7
    %v442 = vsub.s32 2, %v441
    %v443 = vrot.slane %v88, %v442
    %v444 = vlaneseq
    %v445 = vshrl.u32 %v444, 7
    %v446 = vsub.s32 3, %v445
    %v447 = vrot.slane %v88, %v446
    %v448 = vlaneseq
    %v449 = vshrl.u32 %v448, 7
    %v450 = vsub.s32 4, %v449
    %v451 = vrot.slane %v88, %v450
    %v452 = vlaneseq
    %v453 = vshrl.u32 %v452, 7
    %v454 = vsub.s32 5, %v453
    %v455 = vrot.slane %v88, %v454
    %v456 = vlaneseq
    %v457 = vshrl.u32 %v456, 7
    %v458 = vsub.s32 6, %v457
    %v459 = vrot.slane %v88, %v458
    %v460 = vlaneseq
    %v461 = vshrl.u32 %v460, 7
    %v462 = vsub.s32 7, %v461
    %v463 = vrot.slane %v88, %v462
    %v600 = vunpack.c.l.b16 %v303
    %v601 = vunpack.c.h.b16 %v303
    %v602 = vunpack.c.l.b16 %v304
    %v603 = vunpack.c.h.b16 %v304
    %v604 = vunpack.c.l.b16 %v305
    %v605 = vunpack.c.h.b16 %v305
    %v606 = vunpack.c.l.b16 %v306
    %v607 = vunpack.c.h.b16 %v306
    %v608 = vunpack.c.l.b16 %v307
    %v609 = vunpack.c.h.b16 %v307
    %v610 = vunpack.c.l.b16 %v308
    %v611 = vunpack.c.h.b16 %v308
    %v612 = vunpack.c.l.b16 %v309
    %v613 = vunpack.c.h.b16 %v309
    %v614 = vunpack.c.l.b16 %v310
    %v615 = vunpack.c.h.b16 %v310
    %v616 = vunpack.c.l.b16 %v311
    %v617 = vunpack.c.h.b16 %v311
    %v618 = vunpack.c.l.b16 %v312
    %v619 = vunpack.c.h.b16 %v312
    %v620 = vunpack.c.l.b16 %v313
    %v621 = vunpack.c.h.b16 %v313
    %v622 = vunpack.c.l.b16 %v314
    %v623 = vunpack.c.h.b16 %v314
    %v624 = vunpack.c.l.b16 %v315
    %v625 = vunpack.c.h.b16 %v315
    %v626 = vunpack.c.l.b16 %v316
    %v627 = vunpack.c.h.b16 %v316
    %v628 = vunpack.c.l.b16 %v317
    %v629 = vunpack.c.h.b16 %v317
    %v630 = vunpack.c.l.b16 %v318
    %v631 = vunpack.c.h.b16 %v318
    %v632 = vunpack.c.l.b16 %v319
    %v633 = vunpack.c.h.b16 %v319
    %v634 = vunpack.c.l.b16 %v320
    %v635 = vunpack.c.h.b16 %v320
    %v636 = vunpack.c.l.b16 %v321
    %v637 = vunpack.c.h.b16 %v321
    %v638 = vunpack.c.l.b16 %v322
    %v639 = vunpack.c.h.b16 %v322
    %v640 = vunpack.c.l.b16 %v323
    %v641 = vunpack.c.h.b16 %v323
    %v642 = vunpack.c.l.b16 %v324
    %v643 = vunpack.c.h.b16 %v324
    %v644 = vunpack.c.l.b16 %v325
    %v645 = vunpack.c.h.b16 %v325
    %v646 = vunpack.c.l.b16 %v326
    %v647 = vunpack.c.h.b16 %v326
    %v648 = vunpack.c.l.b16 %v327
    %v649 = vunpack.c.h.b16 %v327
    %v650 = vunpack.c.l.b16 %v328
    %v651 = vunpack.c.h.b16 %v328
    %v652 = vunpack.c.l.b16 %v329
    %v653 = vunpack.c.h.b16 %v329
    %v654 = vunpack.c.l.b16 %v330
    %v655 = vunpack.c.h.b16 %v330
    %v656 = vunpack.c.l.b16 %v331
    %v657 = vunpack.c.h.b16 %v331
    %v658 = vunpack.c.l.b16 %v332
    %v659 = vunpack.c.h.b16 %v332
    %v660 = vunpack.c.l.b16 %v333
    %v661 = vunpack.c.h.b16 %v333
    %v662 = vunpack.c.l.b16 %v334
    %v663 = vunpack.c.h.b16 %v334
    %v664 = vunpack.c.l.b16 %v335
    %v665 = vunpack.c.h.b16 %v335
    %v666 = vunpack.c.l.b16 %v336
    %v667 = vunpack.c.h.b16 %v336
    %v668 = vunpack.c.l.b16 %v337
    %v669 = vunpack.c.h.b16 %v337
    %v670 = vunpack.c.l.b16 %v338
    %v671 = vunpack.c.h.b16 %v338
    %v672 = vunpack.c.l.b16 %v339
    %v673 = vunpack.c.h.b16 %v339
    %v674 = vunpack.c.l.b16 %v340
    %v675 = vunpack.c.h.b16 %v340
    %v676 = vunpack.c.l.b16 %v341
    %v677 = vunpack.c.h.b16 %v341
    %v678 = vunpack.c.l.b16 %v342
    %v679 = vunpack.c.h.b16 %v342
    %v680 = vunpack.c.l.b16 %v343
    %v681 = vunpack.c.h.b16 %v343
    %v682 = vunpack.c.l.b16 %v344
    %v683 = vunpack.c.h.b16 %v344
    %v684 = vunpack.c.l.b16 %v345
    %v685 = vunpack.c.h.b16 %v345
    %v686 = vunpack.c.l.b16 %v346
    %v687 = vunpack.c.h.b16 %v346
    %v688 = vunpack.c.l.b16 %v347
    %v689 = vunpack.c.h.b16 %v347
    %v690 = vunpack.c.l.b16 %v348
    %v691 = vunpack.c.h.b16 %v348
    %v692 = vunpack.c.l.b16 %v349
    %v693 = vunpack.c.h.b16 %v349
    %v694 = vunpack.c.l.b16 %v350
    %v695 = vunpack.c.h.b16 %v350
    %v696 = vunpack.c.l.b16 %v351
    %v697 = vunpack.c.h.b16 %v351
    %v698 = vunpack.c.l.b16 %v352
    %v699 = vunpack.c.h.b16 %v352
    %v700 = vunpack.c.l.b16 %v353
    %v701 = vunpack.c.h.b16 %v353
    %v702 = vunpack.c.l.b16 %v354
    %v703 = vunpack.c.h.b16 %v354
    %v704 = vunpack.c.l.b16 %v355
    %v705 = vunpack.c.h.b16 %v355
    %v706 = vunpack.c.l.b16 %v356
    %v707 = vunpack.c.h.b16 %v356
    %v708 = vunpack.c.l.b16 %v357
    %v709 = vunpack.c.h.b16 %v357
    %v710 = vunpack.c.l.b16 %v358
    %v711 = vunpack.c.h.b16 %v358
    %v712 = vunpack.c.l.b16 %v359
    %v713 = vunpack.c.h.b16 %v359
    %v714 = vunpack.c.l.b16 %v360
    %v715 = vunpack.c.h.b16 %v360
    %v716 = vunpack.c.l.b16 %v361
    %v717 = vunpack.c.h.b16 %v361
    %v718 = vunpack.c.l.b16 %v362
    %v719 = vunpack.c.h.b16 %v362
    %v720 = vunpack.c.l.b16 %v363
    %v721 = vunpack.c.h.b16 %v363
    %v722 = vunpack.c.l.b16 %v364
    %v723 = vunpack.c.h.b16 %v364
    %v724 = vunpack.c.l.b16 %v365
    %v725 = vunpack.c.h.b16 %v365
    %v726 = vunpack.c.l.b16 %v366
    %v727 = vunpack.c.h.b16 %v366
    %v728 = vunpack.c.l.b16 %v367
    %v729 = vunpack.c.h.b16 %v367
    %v730 = vunpack.c.l.b16 %v368
    %v731 = vunpack.c.h.b16 %v368
    %v732 = vunpack.c.l.b16 %v369
    %v733 = vunpack.c.h.b16 %v369
    %v734 = vunpack.c.l.b16 %v370
    %v735 = vunpack.c.h.b16 %v370
    %v736 = vunpack.c.l.b16 %v371
    %v737 = vunpack.c.h.b16 %v371
    %v738 = vunpack.c.l.b16 %v372
    %v739 = vunpack.c.h.b16 %v372
    %v740 = vunpack.c.l.b16 %v373
    %v741 = vunpack.c.h.b16 %v373
    %v742 = vunpack.c.l.b16 %v374
    %v743 = vunpack.c.h.b16 %v374
    %v744 = vunpack.c.l.b16 %v375
    %v745 = vunpack.c.h.b16 %v375
    %v746 = vunpack.c.l.b16 %v376
    %v747 = vunpack.c.h.b16 %v376
    %v748 = vunpack.c.l.b16 %v377
    %v749 = vunpack.c.h.b16 %v377
    %v750 = vunpack.c.l.b16 %v378
    %v751 = vunpack.c.h.b16 %v378
    %v752 = vunpack.c.l.b16 %v379
    %v753 = vunpack.c.h.b16 %v379
    %v754 = vunpack.c.l.b16 %v380
    %v755 = vunpack.c.h.b16 %v380
    %v756 = vunpack.c.l.b16 %v381
    %v757 = vunpack.c.h.b16 %v381
    %v758 = vunpack.c.l.b16 %v382
    %v759 = vunpack.c.h.b16 %v382
    %v760 = vunpack.c.l.b16 %v383
    %v761 = vunpack.c.h.b16 %v383
    %v762 = vunpack.c.l.b16 %v384
    %v763 = vunpack.c.h.b16 %v384
    %v764 = vunpack.c.l.b16 %v385
    %v765 = vunpack.c.h.b16 %v385
    %v766 = vunpack.c.l.b16 %v386
    %v767 = vunpack.c.h.b16 %v386
    %v768 = vunpack.c.l.b16 %v387
    %v769 = vunpack.c.h.b16 %v387
    %v770 = vunpack.c.l.b16 %v388
    %v771 = vunpack.c.h.b16 %v388
    %v772 = vunpack.c.l.b16 %v389
    %v773 = vunpack.c.h.b16 %v389
    %v774 = vunpack.c.l.b16 %v390
    %v775 = vunpack.c.h.b16 %v390
    %v776 = vunpack.c.l.b16 %v391
    %v777 = vunpack.c.h.b16 %v391
    %v778 = vunpack.c.l.b16 %v392
    %v779 = vunpack.c.h.b16 %v392
    %v780 = vunpack.c.l.b16 %v393
    %v781 = vunpack.c.h.b16 %v393
    %v782 = vunpack.c.l.b16 %v394
    %v783 = vunpack.c.h.b16 %v394
    %v784 = vunpack.c.l.b16 %v395
    %v785 = vunpack.c.h.b16 %v395
    %v786 = vunpack.c.l.b16 %v396
    %v787 = vunpack.c.h.b16 %v396
    %v788 = vunpack.c.l.b16 %v397
    %v789 = vunpack.c.h.b16 %v397
    %v790 = vunpack.c.l.b16 %v398
    %v791 = vunpack.c.h.b16 %v398
    %v792 = vunpack.c.l.b16 %v399
    %v793 = vunpack.c.h.b16 %v399
    %v794 = vunpack.c.l.b16 %v400
    %v795 = vunpack.c.h.b16 %v400
    %v796 = vunpack.c.l.b16 %v401
    %v797 = vunpack.c.h.b16 %v401
    %v798 = vunpack.c.l.b16 %v402
    %v799 = vunpack.c.h.b16 %v402
    %v800 = vunpack.c.l.b16 %v403
    %v801 = vunpack.c.h.b16 %v403
    %v802 = vunpack.c.l.b16 %v404
    %v803 = vunpack.c.h.b16 %v404
    %v804 = vunpack.c.l.b16 %v405
    %v805 = vunpack.c.h.b16 %v405
    %v806 = vunpack.c.l.b16 %v406
    %v807 = vunpack.c.h.b16 %v406
    %v808 = vunpack.c.l.b16 %v407
    %v809 = vunpack.c.h.b16 %v407
    %v810 = vunpack.c.l.b16 %v408
    %v811 = vunpack.c.h.b16 %v408
    %v812 = vunpack.c.l.b16 %v409
    %v813 = vunpack.c.h.b16 %v409
    %v814 = vunpack.c.l.b16 %v410
    %v815 = vunpack.c.h.b16 %v410
    %v816 = vunpack.c.l.b16 %v411
    %v817 = vunpack.c.h.b16 %v411
    %v818 = vunpack.c.l.b16 %v412
    %v819 = vunpack.c.h.b16 %v412
    %v820 = vunpack.c.l.b16 %v413
    %v821 = vunpack.c.h.b16 %v413
    %v822 = vunpack.c.l.b16 %v414
    %v823 = vunpack.c.h.b16 %v414
    %v824 = vunpack.c.l.b16 %v415
    %v825 = vunpack.c.h.b16 %v415
    %v826 = vunpack.c.l.b16 %v416
    %v827 = vunpack.c.h.b16 %v416
    %v828 = vunpack.c.l.b16 %v417
    %v829 = vunpack.c.h.b16 %v417
    %v830 = vunpack.c.l.b16 %v418
    %v831 = vunpack.c.h.b16 %v418
    %v832 = vunpack.c.l.b16 %v419
    %v833 = vunpack.c.h.b16 %v419
    %v834 = vunpack.c.l.b16 %v420
    %v835 = vunpack.c.h.b16 %v420
    %v836 = vunpack.c.l.b16 %v421
    %v837 = vunpack.c.h.b16 %v421
    %v838 = vunpack.c.l.b16 %v422
    %v839 = vunpack.c.h.b16 %v422
    %v840 = vunpack.c.l.b16 %v423
    %v841 = vunpack.c.h.b16 %v423
    %v842 = vunpack.c.l.b16 %v424
    %v843 = vunpack.c.h.b16 %v424
    %v844 = vunpack.c.l.b16 %v425
    %v845 = vunpack.c.h.b16 %v425
    %v846 = vunpack.c.l.b16 %v426
    %v847 = vunpack.c.h.b16 %v426
    %v848 = vunpack.c.l.b16 %v427
    %v849 = vunpack.c.h.b16 %v427
    %v850 = vunpack.c.l.b16 %v428
    %v851 = vunpack.c.h.b16 %v428
    %v852 = vunpack.c.l.b16 %v429
    %v853 = vunpack.c.h.b16 %v429
    %v854 = vunpack.c.l.b16 %v430
    %v855 = vunpack.c.h.b16 %v430
    %v856 = vpack.c.b16 %v608, %v600
    %v857 = vpack.c.b16 %v609, %v601
    %v858 = vpack.c.b16 %v610, %v602
    %v859 = vpack.c.b16 %v611, %v603
    %v860 = vpack.c.b16 %v612, %v604
    %v861 = vpack.c.b16 %v613, %v605
    %v862 = vpack.c.b16 %v614, %v606
    %v863 = vpack.c.b16 %v615, %v607
    %v864 = vpack.c.b16 %v624, %v616
    %v865 = vpack.c.b16 %v625, %v617
    %v866 = vpack.c.b16 %v626, %v618
    %v867 = vpack.c.b16 %v627, %v619
    %v868 = vpack.c.b16 %v628, %v620
    %v869 = vpack.c.b16 %v629, %v621
    %v870 = vpack.c.b16 %v630, %v622
    %v871 = vpack.c.b16 %v631, %v623
    %v872 = vpack.c.b16 %v640, %v632
    %v873 = vpack.c.b16 %v641, %v633
    %v874 = vpack.c.b16 %v642, %v634
    %v875 = vpack.c.b16 %v643, %v635
    %v876 = vpack.c.b16 %v644, %v636
    %v877 = vpack.c.b16 %v645, %v637
    %v878 = vpack.c.b16 %v646, %v638
    %v879 = vpack.c.b16 %v647, %v639
    %v880 = vpack.c.b16 %v656, %v648
    %v881 = vpack.c.b16 %v657, %v649
    %v882 = vpack.c.b16 %v658, %v650
    %v883 = vpack.c.b16 %v659, %v651
    %v884 = vpack.c.b16 %v660, %v652
    %v885 = vpack.c.b16 %v661, %v653
    %v886 = vpack.c.b16 %v662, %v654
    %v887 = vpack.c.b16 %v663, %v655
    %v888 = vpack.c.b16 %v672, %v664
    %v889 = vpack.c.b16 %v673, %v665
    %v890 = vpack.c.b16 %v674, %v666
    %v891 = vpack.c.b16 %v675, %v667
    %v892 = vpack.c.b16 %v676, %v668
    %v893 = vpack.c.b16 %v677, %v669
    %v894 = vpack.c.b16 %v678, %v670
    %v895 = vpack.c.b16 %v679, %v671
    %v896 = vpack.c.b16 %v688, %v680
    %v897 = vpack.c.b16 %v689, %v681
    %v898 = vpack.c.b16 %v690, %v682
    %v899 = vpack.c.b16 %v691, %v683
    %v900 = vpack.c.b16 %v692, %v684
    %v901 = vpack.c.b16 %v693, %v685
    %v902 = vpack.c.b16 %v694, %v686
    %v903 = vpack.c.b16 %v695, %v687
    %v904 = vpack.c.b16 %v704, %v696
    %v905 = vpack.c.b16 %v705, %v697
    %v906 = vpack.c.b16 %v706, %v698
    %v907 = vpack.c.b16 %v707, %v699
    %v908 = vpack.c.b16 %v708, %v700
    %v909 = vpack.c.b16 %v709, %v701
    %v910 = vpack.c.b16 %v710, %v702
    %v911 = vpack.c.b16 %v711, %v703
    %v912 = vpack.c.b16 %v720, %v712
    %v913 = vpack.c.b16 %v721, %v713
    %v914 = vpack.c.b16 %v722, %v714
    %v915 = vpack.c.b16 %v723, %v715
    %v916 = vpack.c.b16 %v724, %v716
    %v917 = vpack.c.b16 %v725, %v717
    %v918 = vpack.c.b16 %v726, %v718
    %v919 = vpack.c.b16 %v727, %v719
    %v920 = vpack.c.b16 %v736, %v728
    %v921 = vpack.c.b16 %v737, %v729
    %v922 = vpack.c.b16 %v738, %v730
    %v923 = vpack.c.b16 %v739, %v731
    %v924 = vpack.c.b16 %v740, %v732
    %v925 = vpack.c.b16 %v741, %v733
    %v926 = vpack.c.b16 %v742, %v734
    %v927 = vpack.c.b16 %v743, %v735
    %v928 = vpack.c.b16 %v752, %v744
    %v929 = vpack.c.b16 %v753, %v745
    %v930 = vpack.c.b16 %v754, %v746
    %v931 = vpack.c.b16 %v755, %v747
    %v932 = vpack.c.b16 %v756, %v748
    %v933 = vpack.c.b16 %v757, %v749
    %v934 = vpack.c.b16 %v758, %v750
    %v935 = vpack.c.b16 %v759, %v751
    %v936 = vpack.c.b16 %v768, %v760
    %v937 = vpack.c.b16 %v769, %v761
    %v938 = vpack.c.b16 %v770, %v762
    %v939 = vpack.c.b16 %v771, %v763
    %v940 = vpack.c.b16 %v772, %v764
    %v941 = vpack.c.b16 %v773, %v765
    %v942 = vpack.c.b16 %v774, %v766
    %v943 = vpack.c.b16 %v775, %v767
    %v944 = vpack.c.b16 %v784, %v776
    %v945 = vpack.c.b16 %v785, %v777
    %v946 = vpack.c.b16 %v786, %v778
    %v947 = vpack.c.b16 %v787, %v779
    %v948 = vpack.c.b16 %v788, %v780
    %v949 = vpack.c.b16 %v789, %v781
    %v950 = vpack.c.b16 %v790, %v782
    %v951 = vpack.c.b16 %v791, %v783
    %v952 = vpack.c.b16 %v800, %v792
    %v953 = vpack.c.b16 %v801, %v793
    %v954 = vpack.c.b16 %v802, %v794
    %v955 = vpack.c.b16 %v803, %v795
    %v956 = vpack.c.b16 %v804, %v796
    %v957 = vpack.c.b16 %v805, %v797
    %v958 = vpack.c.b16 %v806, %v798
    %v959 = vpack.c.b16 %v807, %v799
    %v960 = vpack.c.b16 %v816, %v808
    %v961 = vpack.c.b16 %v817, %v809
    %v962 = vpack.c.b16 %v818, %v810
    %v963 = vpack.c.b16 %v819, %v811
    %v964 = vpack.c.b16 %v820, %v812
    %v965 = vpack.c.b16 %v821, %v813
    %v966 = vpack.c.b16 %v822, %v814
    %v967 = vpack.c.b16 %v823, %v815
    %v968 = vpack.c.b16 %v832, %v824
    %v969 = vpack.c.b16 %v833, %v825
    %v970 = vpack.c.b16 %v834, %v826
    %v971 = vpack.c.b16 %v835, %v827
    %v972 = vpack.c.b16 %v836, %v828
    %v973 = vpack.c.b16 %v837, %v829
    %v974 = vpack.c.b16 %v838, %v830
    %v975 = vpack.c.b16 %v839, %v831
    %v976 = vpack.c.b16 %v848, %v840
    %v977 = vpack.c.b16 %v849, %v841
    %v978 = vpack.c.b16 %v850, %v842
    %v979 = vpack.c.b16 %v851, %v843
    %v980 = vpack.c.b16 %v852, %v844
    %v981 = vpack.c.b16 %v853, %v845
    %v982 = vpack.c.b16 %v854, %v846
    %v983 = vpack.c.b16 %v855, %v847
    %1112 = vmatprep.subr.bf16.mxu0 %v913
    %1113 = vmatpush1.bf16.msra.mxu0 %v912
    %1114 = vmatprep.subr.bf16.mxu0 %v905
    %1115 = vmatpush1.bf16.msra.mxu0 %v904
    %1116 = vmatprep.subr.bf16.mxu0 %v897
    %1117 = vmatpush1.bf16.msra.mxu0 %v896
    %1118 = vmatprep.subr.bf16.mxu0 %v889
    %1119 = vmatpush1.bf16.msra.mxu0 %v888
    %1120 = vmatprep.subr.bf16.mxu0 %v881
    %1121 = vmatpush1.bf16.msra.mxu0 %v880
    %1122 = vmatprep.subr.bf16.mxu0 %v873
    %1123 = vmatpush1.bf16.msra.mxu0 %v872
    %1124 = vmatprep.subr.bf16.mxu0 %v865
    %1125 = vmatpush1.bf16.msra.mxu0 %v864
    %1126 = vmatprep.subr.bf16.mxu0 %v857
    %1127 = vmatpush1.bf16.msra.mxu0 %v856
    %1128 = vmatprep.subr.bf16.mxu0 %v977
    %1129 = vmatpush2.bf16.msra.mxu0 %v976
    %1130 = vmatprep.subr.bf16.mxu0 %v969
    %1131 = vmatpush2.bf16.msra.mxu0 %v968
    %1132 = vmatprep.subr.bf16.mxu0 %v961
    %1133 = vmatpush2.bf16.msra.mxu0 %v960
    %1134 = vmatprep.subr.bf16.mxu0 %v953
    %1135 = vmatpush2.bf16.msra.mxu0 %v952
    %1136 = vmatprep.subr.bf16.mxu0 %v945
    %1137 = vmatpush2.bf16.msra.mxu0 %v944
    %1138 = vmatprep.subr.bf16.mxu0 %v937
    %1139 = vmatpush2.bf16.msra.mxu0 %v936
    %1140 = vmatprep.subr.bf16.mxu0 %v929
    %1141 = vmatpush2.bf16.msra.mxu0 %v928
    %1142 = vmatprep.subr.bf16.mxu0 %v921
    %1143 = vmatpush2.bf16.msra.mxu0 %v920
    %1144 = vmatprep.mubr.bf16.mxu0 %v302
    %1145 = vmatmul.mubr.bf16.gmra.mxu0 %v301
    %v1146 = vpop.f32.mrf.mxu0
    %v1147 = vadd.f32 %v435, %v1146
    %v1148 = vpop.f32.mrf.mxu0
    %v1149 = vadd.f32 %v439, %v1148
    %v1150 = vpop.f32.mrf.mxu0
    %v1151 = vpop.f32.mrf.mxu0
    %1152 = vdwg.mxu0
    %1153 = vmatprep.subr.bf16.mxu0 %v915
    %1154 = vmatpush1.bf16.msra.mxu0 %v914
    %1155 = vmatprep.subr.bf16.mxu0 %v907
    %1156 = vmatpush1.bf16.msra.mxu0 %v906
    %1157 = vmatprep.subr.bf16.mxu0 %v899
    %1158 = vmatpush1.bf16.msra.mxu0 %v898
    %1159 = vmatprep.subr.bf16.mxu0 %v891
    %1160 = vmatpush1.bf16.msra.mxu0 %v890
    %1161 = vmatprep.subr.bf16.mxu0 %v883
    %1162 = vmatpush1.bf16.msra.mxu0 %v882
    %1163 = vmatprep.subr.bf16.mxu0 %v875
    %1164 = vmatpush1.bf16.msra.mxu0 %v874
    %1165 = vmatprep.subr.bf16.mxu0 %v867
    %1166 = vmatpush1.bf16.msra.mxu0 %v866
    %1167 = vmatprep.subr.bf16.mxu0 %v859
    %1168 = vmatpush1.bf16.msra.mxu0 %v858
    %1169 = vmatprep.subr.bf16.mxu0 %v979
    %1170 = vmatpush2.bf16.msra.mxu0 %v978
    %1171 = vmatprep.subr.bf16.mxu0 %v971
    %1172 = vmatpush2.bf16.msra.mxu0 %v970
    %1173 = vmatprep.subr.bf16.mxu0 %v963
    %1174 = vmatpush2.bf16.msra.mxu0 %v962
    %1175 = vmatprep.subr.bf16.mxu0 %v955
    %1176 = vmatpush2.bf16.msra.mxu0 %v954
    %1177 = vmatprep.subr.bf16.mxu0 %v947
    %1178 = vmatpush2.bf16.msra.mxu0 %v946
    %1179 = vmatprep.subr.bf16.mxu0 %v939
    %1180 = vmatpush2.bf16.msra.mxu0 %v938
    %1181 = vmatprep.subr.bf16.mxu0 %v931
    %1182 = vmatpush2.bf16.msra.mxu0 %v930
    %1183 = vmatprep.subr.bf16.mxu0 %v923
    %1184 = vmatpush2.bf16.msra.mxu0 %v922
    %1185 = vmatprep.mubr.bf16.mxu0 %v302
    %1186 = vmatmul.mubr.bf16.gmra.mxu0 %v301
    %v1187 = vpop.f32.mrf.mxu0
    %v1188 = vadd.f32 %v443, %v1187
    %v1189 = vpop.f32.mrf.mxu0
    %v1190 = vadd.f32 %v447, %v1189
    %v1191 = vpop.f32.mrf.mxu0
    %v1192 = vpop.f32.mrf.mxu0
    %1193 = vdwg.mxu0
    %1194 = vmatprep.subr.bf16.mxu0 %v917
    %1195 = vmatpush1.bf16.msra.mxu0 %v916
    %1196 = vmatprep.subr.bf16.mxu0 %v909
    %1197 = vmatpush1.bf16.msra.mxu0 %v908
    %1198 = vmatprep.subr.bf16.mxu0 %v901
    %1199 = vmatpush1.bf16.msra.mxu0 %v900
    %1200 = vmatprep.subr.bf16.mxu0 %v893
    %1201 = vmatpush1.bf16.msra.mxu0 %v892
    %1202 = vmatprep.subr.bf16.mxu0 %v885
    %1203 = vmatpush1.bf16.msra.mxu0 %v884
    %1204 = vmatprep.subr.bf16.mxu0 %v877
    %1205 = vmatpush1.bf16.msra.mxu0 %v876
    %1206 = vmatprep.subr.bf16.mxu0 %v869
    %1207 = vmatpush1.bf16.msra.mxu0 %v868
    %1208 = vmatprep.subr.bf16.mxu0 %v861
    %1209 = vmatpush1.bf16.msra.mxu0 %v860
    %1210 = vmatprep.subr.bf16.mxu0 %v981
    %1211 = vmatpush2.bf16.msra.mxu0 %v980
    %1212 = vmatprep.subr.bf16.mxu0 %v973
    %1213 = vmatpush2.bf16.msra.mxu0 %v972
    %1214 = vmatprep.subr.bf16.mxu0 %v965
    %1215 = vmatpush2.bf16.msra.mxu0 %v964
    %1216 = vmatprep.subr.bf16.mxu0 %v957
    %1217 = vmatpush2.bf16.msra.mxu0 %v956
    %1218 = vmatprep.subr.bf16.mxu0 %v949
    %1219 = vmatpush2.bf16.msra.mxu0 %v948
    %1220 = vmatprep.subr.bf16.mxu0 %v941
    %1221 = vmatpush2.bf16.msra.mxu0 %v940
    %1222 = vmatprep.subr.bf16.mxu0 %v933
    %1223 = vmatpush2.bf16.msra.mxu0 %v932
    %1224 = vmatprep.subr.bf16.mxu0 %v925
    %1225 = vmatpush2.bf16.msra.mxu0 %v924
    %1226 = vmatprep.mubr.bf16.mxu0 %v302
    %1227 = vmatmul.mubr.bf16.gmra.mxu0 %v301
    %v1228 = vpop.f32.mrf.mxu0
    %v1229 = vadd.f32 %v451, %v1228
    %v1230 = vpop.f32.mrf.mxu0
    %v1231 = vadd.f32 %v455, %v1230
    %v1232 = vpop.f32.mrf.mxu0
    %v1233 = vpop.f32.mrf.mxu0
    %1234 = vdwg.mxu0
    %1235 = vmatprep.subr.bf16.mxu0 %v919
    %1236 = vmatpush1.bf16.msra.mxu0 %v918
    %1237 = vmatprep.subr.bf16.mxu0 %v911
    %1238 = vmatpush1.bf16.msra.mxu0 %v910
    %1239 = vmatprep.subr.bf16.mxu0 %v903
    %1240 = vmatpush1.bf16.msra.mxu0 %v902
    %1241 = vmatprep.subr.bf16.mxu0 %v895
    %1242 = vmatpush1.bf16.msra.mxu0 %v894
    %1243 = vmatprep.subr.bf16.mxu0 %v887
    %1244 = vmatpush1.bf16.msra.mxu0 %v886
    %1245 = vmatprep.subr.bf16.mxu0 %v879
    %1246 = vmatpush1.bf16.msra.mxu0 %v878
    %1247 = vmatprep.subr.bf16.mxu0 %v871
    %1248 = vmatpush1.bf16.msra.mxu0 %v870
    %1249 = vmatprep.subr.bf16.mxu0 %v863
    %1250 = vmatpush1.bf16.msra.mxu0 %v862
    %1251 = vmatprep.subr.bf16.mxu0 %v983
    %1252 = vmatpush2.bf16.msra.mxu0 %v982
    %1253 = vmatprep.subr.bf16.mxu0 %v975
    %1254 = vmatpush2.bf16.msra.mxu0 %v974
    %1255 = vmatprep.subr.bf16.mxu0 %v967
    %1256 = vmatpush2.bf16.msra.mxu0 %v966
    %1257 = vmatprep.subr.bf16.mxu0 %v959
    %1258 = vmatpush2.bf16.msra.mxu0 %v958
    %1259 = vmatprep.subr.bf16.mxu0 %v951
    %1260 = vmatpush2.bf16.msra.mxu0 %v950
    %1261 = vmatprep.subr.bf16.mxu0 %v943
    %1262 = vmatpush2.bf16.msra.mxu0 %v942
    %1263 = vmatprep.subr.bf16.mxu0 %v935
    %1264 = vmatpush2.bf16.msra.mxu0 %v934
    %1265 = vmatprep.subr.bf16.mxu0 %v927
    %1266 = vmatpush2.bf16.msra.mxu0 %v926
    %1267 = vmatprep.mubr.bf16.mxu0 %v302
    %1268 = vmatmul.mubr.bf16.gmra.mxu0 %v301
    %v1269 = vpop.f32.mrf.mxu0
    %v1270 = vadd.f32 %v459, %v1269
    %v1271 = vpop.f32.mrf.mxu0
    %v1272 = vadd.f32 %v463, %v1271
    %v1273 = vpop.f32.mrf.mxu0
    %v1274 = vpop.f32.mrf.mxu0
    %1275 = vdwg.mxu0
    %v1276 = vxor.u32 %v1147, 2147483648
    %v1277 = vxor.u32 %v1149, 2147483648
    %v1278 = vxor.u32 %v1188, 2147483648
    %v1279 = vxor.u32 %v1190, 2147483648
    %v1280 = vxor.u32 %v1229, 2147483648
    %v1281 = vxor.u32 %v1231, 2147483648
    %v1282 = vxor.u32 %v1270, 2147483648
    %v1283 = vxor.u32 %v1272, 2147483648
    %v1284 = vmul.f32 %v1276, 1.442695
    %v1285 = vpow.pop %v1284
    %v1286 = vmul.f32 %v1277, 1.442695
    %v1287 = vpow.pop %v1286
    %v1288 = vmul.f32 %v1278, 1.442695
    %v1289 = vpow.pop %v1288
    %v1290 = vmul.f32 %v1279, 1.442695
    %v1291 = vpow.pop %v1290
    %v1292 = vmul.f32 %v1280, 1.442695
    %v1293 = vpow.pop %v1292
    %v1294 = vmul.f32 %v1281, 1.442695
    %v1295 = vpow.pop %v1294
    %v1296 = vmul.f32 %v1282, 1.442695
    %v1297 = vpow.pop %v1296
    %v1298 = vmul.f32 %v1283, 1.442695
    %v1299 = vpow.pop %v1298
    %v1300 = vadd.f32 %v1285, 1.0
    %v1301 = vadd.f32 %v1287, 1.0
    %v1302 = vadd.f32 %v1289, 1.0
    %v1303 = vadd.f32 %v1291, 1.0
    %v1304 = vadd.f32 %v1293, 1.0
    %v1305 = vadd.f32 %v1295, 1.0
    %v1306 = vadd.f32 %v1297, 1.0
    %v1307 = vadd.f32 %v1299, 1.0
    %v1308 = vrcp.pop %v1300
    %v1309 = vmul.f32 1.0, %v1308
    %v1310 = vrcp.pop %v1301
    %v1311 = vmul.f32 1.0, %v1310
    %v1312 = vrcp.pop %v1302
    %v1313 = vmul.f32 1.0, %v1312
    %v1314 = vrcp.pop %v1303
    %v1315 = vmul.f32 1.0, %v1314
    %v1316 = vrcp.pop %v1304
    %v1317 = vmul.f32 1.0, %v1316
    %v1318 = vrcp.pop %v1305
    %v1319 = vmul.f32 1.0, %v1318
    %v1320 = vrcp.pop %v1306
    %v1321 = vmul.f32 1.0, %v1320
    %v1322 = vrcp.pop %v1307
    %v1323 = vmul.f32 1.0, %v1322
    %1324 = vst [vmem:[#allocation11] sm:$0xff] %v1309
    %1325 = vst [vmem:[#allocation11 + $0x8] sm:$0xff] %v1311
    %1326 = vst [vmem:[#allocation11 + $0x10] sm:$0xff] %v1313
    %1327 = vst [vmem:[#allocation11 + $0x18] sm:$0xff] %v1315
    %1328 = vst [vmem:[#allocation11 + $0x20] sm:$0xff] %v1317
    %1329 = vst [vmem:[#allocation11 + $0x28] sm:$0xff] %v1319
    %1330 = vst [vmem:[#allocation11 + $0x30] sm:$0xff] %v1321
    %1331 = vst [vmem:[#allocation11 + $0x38] sm:$0xff] %v1323
    // Predicated region
    $region42: #{tpu_custom_call.1} parent=1 // pred_check
      _
    $region43: #{tpu_custom_call.1} parent=1 // pred_check_branch
      %1333 = sbr.rel (0) target = $region45
    $region44: #{tpu_custom_call.1} parent=1 // pred_region
      %s1335 = ssub.s32 1024, 1024
      %1336 = vsyncadd [#allocation4], %s1335
      %s1338 = sshll.u32 [#allocation11], 4
      %s1339 = int_to_ptr.vmem [resolvable:$true] %s1338
      %1341 = dma.vmem_to_hbm [thread:$0]  %s1339, 1024, %s5, [#allocation4]
    $region45: #{tpu_custom_call.1} parent=1 // pred_fallthru
      _
    // Predicated region
    $region46: #{tpu_custom_call.1} parent=1 // pred_check
      _
    $region47: #{tpu_custom_call.1} parent=1 // pred_check_branch
      %1343 = sbr.rel (0) target = $region49
    $region48: #{tpu_custom_call.1} parent=1 // pred_region
      %1344 = dma.done [#allocation4], 1024
    $region49: #{tpu_custom_call.1} parent=1 // pred_fallthru
      _
    %1345 = vsyncpa [#allocation3], 1
    %1346 = vsyncpa [#allocation6], 1
    %1347 = vsyncpa [#allocation9], 1
    %1348 = vsyncpa [#allocation4], 1

</llo_original>
